<compile_context>
chip_gen: v6e
topology: v6e:2x2x1
jax: 0.10.0
libtpu: 0.0.40
codegen_flags: <defaults>
</compile_context>

<pallas_src>
import functools

import jax
import jax.numpy as jnp
from jax.experimental import pallas as pl
from jax.experimental.pallas import tpu as pltpu

_EPS = 1e-5


def _device_kind():
    try:
        return jax.devices()[0].device_kind.lower()
    except Exception:
        return ""


_KIND = _device_kind()
# v5e/v6e: 128 MiB physical VMEM -> larger scoped budget; v7x (64 MiB) and
# unknown parts stay at the conservative 32 MiB scoped limit.
_BIG_VMEM = ("v5" in _KIND) or ("v6" in _KIND)
_VMEM_BUDGET = (40 if _BIG_VMEM else 20) * 1024 * 1024
_VMEM_LIMIT = (64 if _BIG_VMEM else 32) * 1024 * 1024
_NUM_TC = 2 if "v7" in _KIND else 1          # v7x: 2 TensorCores per chip


# ----------------------------------------------------------------------------
# Fused pointwise-conv + BN (+SE gate)(+residual)(+ReLU) Pallas kernel
# ----------------------------------------------------------------------------
def _pw_conv_bn_kernel(*refs, relu, has_residual, has_gate, use_mxu, nb):
    # x_ref:    (nb, C_in,  TM)  input tile, channels on sublanes, spatial on lanes
    # w_ref:    (C_out, C_in)    weight with BN scale pre-folded (activation dtype)
    # off_ref:  (C_out, 1)       BN offset (f32), lane-broadcast
    # gate_ref: (nb, C_in, 1)    optional SE gate (per batch & channel)
    # res_ref:  (nb, C_out, TM)  optional residual tile
    # o_ref:    (nb, C_out, TM)  output tile (lane-dense stores when TM >= 128)
    it = iter(refs)
    x_ref = next(it)
    w_ref = next(it)
    off_ref = next(it)
    gate_ref = next(it) if has_gate else None
    res_ref = next(it) if has_residual else None
    o_ref = next(it)

    w = w_ref[...]                      # (C_out, C_in)
    off = off_ref[...]                  # (C_out, 1) f32

    for b in range(nb):                 # static unroll over the batch tile
        xb = x_ref[b]                   # (C_in, TM)
        if has_gate:
            xb = xb * gate_ref[b]       # SE gate applied to the conv3 INPUT
        if use_mxu:
            y = jnp.dot(w, xb, preferred_element_type=jnp.float32)
        else:
            # Tiny contraction: VPU broadcast-multiply-accumulate, skip MXU latency.
            wf = w.astype(jnp.float32)
            xf = xb.astype(jnp.float32)
            y = wf[:, 0:1] * xf[0:1, :]
            for c in range(1, wf.shape[1]):
                y = y + wf[:, c:c + 1] * xf[c:c + 1, :]
        y = y + off
        if has_residual:
            y = y + res_ref[b].astype(jnp.float32)
        if relu:
            y = jnp.maximum(y, 0.0)
        o_ref[b] = y.astype(o_ref.dtype)


def _pick_tiles(n, m, c_in, c_out, has_res, x_bytes, out_bytes, res_bytes):
    """Pick (nb, tm): batch-block and lane (spatial) tile width."""
    # lane tile: multiple of 128 whenever the array allows it
    if m <= 128:
        # TODO(synk): fold batch into the lane axis to avoid masked sub-128 stores
        tm = m
    else:
        tm = min(2048, m)
        tm = max(128, (tm // 128) * 128)

    # per-(image, lane-column) VMEM bytes:
    #   double-buffered streamed tiles (actual dtypes) + f32 intermediates
    bpc = (2 * c_in * x_bytes            # input tile, double buffered
           + 2 * c_out * out_bytes       # output tile, double buffered
           + 4 * c_out                   # f32 dot accumulator / epilogue temp
           + 4 * c_in)                   # f32 / gated input temp (conservative)
    if has_res:
        bpc += 2 * c_out * res_bytes + 4 * c_out   # residual tile + f32 cast temp

    # shrink tm only if a single image at this width already exceeds the budget
    while tm > 128 and tm * bpc > _VMEM_BUDGET:
        tm -= 128

    # block several images per grid step to amortize the ~0.35us per-step cost
    nb = max(1, min(8, n, _VMEM_BUDGET // max(1, tm * bpc)))
    while n % nb != 0:
        nb -= 1

    # only on multi-TensorCore parts (v7x): make sure both cores get a block
    if _NUM_TC > 1 and pl.cdiv(n, nb) * pl.cdiv(m, tm) < _NUM_TC:
        if n >= _NUM_TC:
            nb = max(1, n // _NUM_TC)
            while n % nb != 0:
                nb -= 1
        else:
            while tm > 128 and pl.cdiv(m, tm) < _NUM_TC:
                tm -= 128
    return nb, tm


@functools.partial(jax.jit, static_argnames=("relu",))
def pointwise_conv_bn_act(x, w_folded, offset, residual=None, gate=None, *,
                          relu=False):
    """Fused 1x1 conv (BN scale folded into w) + BN offset (+SE gate)(+res)(+ReLU).

    x: NCHW.  gate: (N, C_in) per-batch/channel multiplier applied to the input.
    """
    n, c_in, h, w_sp = x.shape
    c_out = w_folded.shape[0]
    m = h * w_sp

    x3 = x.reshape(n, c_in, m)                          # free reshape, stays NCHW
    w_k = w_folded.astype(x.dtype)                      # bf16 weights for bf16 acts
    off2 = offset.reshape(c_out, 1).astype(jnp.float32)

    has_res = residual is not None
    has_gate = gate is not None
    x_bytes = x.dtype.itemsize
    res_bytes = residual.dtype.itemsize if has_res else 0
    nb, tm = _pick_tiles(n, m, c_in, c_out, has_res, x_bytes, x_bytes, res_bytes)
    grid = (pl.cdiv(n, nb), pl.cdiv(m, tm))

    in_specs = [
        pl.BlockSpec((nb, c_in, tm), lambda b, j: (b, 0, j)),
        pl.BlockSpec((c_out, c_in), lambda b, j: (0, 0)),
        pl.BlockSpec((c_out, 1), lambda b, j: (0, 0)),
    ]
    args = [x3, w_k, off2]
    if has_gate:
        in_specs.append(pl.BlockSpec((nb, c_in, 1), lambda b, j: (b, 0, 0)))
        args.append(gate.reshape(n, c_in, 1).astype(x.dtype))
    if has_res:
        in_specs.append(pl.BlockSpec((nb, c_out, tm), lambda b, j: (b, 0, j)))
        args.append(residual.reshape(n, c_out, m))

    use_mxu = (c_in > 8) or (c_out >= 64)
    kernel = functools.partial(
        _pw_conv_bn_kernel, relu=relu, has_residual=has_res, has_gate=has_gate,
        use_mxu=use_mxu, nb=nb)

    out3 = pl.pallas_call(
        kernel,
        out_shape=jax.ShapeDtypeStruct((n, c_out, m), x.dtype),
        grid_spec=pltpu.PrefetchScalarGridSpec(
            num_scalar_prefetch=0,
            grid=grid,
            in_specs=in_specs,
            out_specs=pl.BlockSpec((nb, c_out, tm), lambda b, j: (b, 0, j)),
        ),
        compiler_params=pltpu.CompilerParams(
            dimension_semantics=("parallel", "parallel"),
            vmem_limit_bytes=_VMEM_LIMIT,
        ),
    )(*args)
    return out3.reshape(n, c_out, h, w_sp)


# ----------------------------------------------------------------------------
# XLA glue: grouped/dilated 3x3 conv (channels-last) + BN offset + ReLU
# ----------------------------------------------------------------------------
@functools.partial(jax.jit, static_argnames=("dilations", "stride", "groups"))
def grouped_dilated_conv_bn_relu(x, weights, off2, *, dilations, stride, groups):
    """x: NCHW; weights: tuple of HWIO kernels with BN2 scale folded."""
    # TODO(synk): replace with a Pallas grouped/dilated 3x3 conv kernel.
    xh = jnp.transpose(x, (0, 2, 3, 1))                         # NCHW -> NHWC
    parts = jnp.split(xh, len(weights), axis=3) if len(weights) > 1 else [xh]
    outs = []
    for xi, wi, d in zip(parts, weights, dilations):
        outs.append(jax.lax.conv_general_dilated(
            xi, wi, window_strides=(stride, stride),
            padding=[(d, d), (d, d)], rhs_dilation=(d, d),
            dimension_numbers=('NHWC', 'HWIO', 'NHWC'),
            feature_group_count=groups))
    yh = outs[0] if len(outs) == 1 else jnp.concatenate(outs, axis=3)
    yh = jax.nn.relu(yh + off2[None, None, None, :])            # fused epilogue
    return jnp.transpose(yh, (0, 3, 1, 2))                      # NHWC -> NCHW


@jax.jit
def se_gate(h, w1, b1, w2, b2):
    """SE gate only (N, C); the multiply is fused into the conv3 Pallas kernel."""
    y = jnp.mean(h, axis=(2, 3))                                # global avg pool
    y = jax.nn.relu(y @ w1.T + b1)
    y = jax.nn.sigmoid(y @ w2.T + b2)
    return y


# ----------------------------------------------------------------------------
# Parameter helpers (synthetic init + eval-mode BN folding)
# ----------------------------------------------------------------------------
def _init_bn(key, c):
    kg, kb, km, kv = jax.random.split(key, 4)
    gamma = 1.0 + 0.1 * jax.random.normal(kg, (c,), jnp.float32)
    beta = 0.1 * jax.random.normal(kb, (c,), jnp.float32)
    mean = 0.05 * jax.random.normal(km, (c,), jnp.float32)
    var = jnp.abs(1.0 + 0.1 * jax.random.normal(kv, (c,), jnp.float32))
    return gamma, beta, mean, var


def _fold_bn(w, bn, eps=_EPS):
    g, b, m, v = bn
    scale = g / jnp.sqrt(v + eps)
    return w * scale[:, None], b - m * scale


def _bn_eval(x, g, b, m, v, eps=_EPS):
    inv = g / jnp.sqrt(v + eps)
    return x * inv[None, :, None, None] + (b - m * inv)[None, :, None, None]


def _conv1x1(x, w):                       # reference: w (C_out, C_in), x NCHW
    return jnp.einsum('oi,nihw->nohw', w, x)


def avg_pool_2x2_ceil(x):
    """PyTorch AvgPool2d(2, 2, ceil_mode=True) with padding=0."""
    n, c, h, w = x.shape
    ho, wo = -(-h // 2), -(-w // 2)
    ph, pw = ho * 2 - h, wo * 2 - w
    xp = jnp.pad(x, ((0, 0), (0, 0), (0, ph), (0, pw)))
    sums = xp.reshape(n, c, ho, 2, wo, 2).sum(axis=(3, 5))
    ones = jnp.pad(jnp.ones((h, w), x.dtype), ((0, ph), (0, pw)))
    counts = ones.reshape(ho, 2, wo, 2).sum(axis=(1, 3))
    return sums / counts


def _se_apply(x, w1, b1, w2, b2):
    y = jnp.mean(x, axis=(2, 3))
    y = jax.nn.relu(y @ w1.T + b1)
    y = jax.nn.sigmoid(y @ w2.T + b2)
    return x * y[:, :, None, None]


# ----------------------------------------------------------------------------
# Modules (eval-mode BN only)
# ----------------------------------------------------------------------------
class Shortcut:
    """JAX/Pallas port of d_block.py::Shortcut (eval-mode BN)."""

    def __init__(self, in_channels, out_channels, stride=1, key=None):
        self.stride = stride
        if in_channels == out_channels and stride == 1:
            self.params = None
        else:
            if key is None:
                key = jax.random.PRNGKey(0)
            kw, kbn = jax.random.split(key)
            w = 0.1 * jax.random.normal(kw, (out_channels, in_channels), jnp.float32)
            bn = _init_bn(kbn, out_channels)
            self.params = (w, bn)
            self.w_f, self.off = _fold_bn(w, bn)

    def __call__(self, x):
        if self.params is None:
            return x
        if self.stride != 1:
            # TODO(synk): fold the conv stride into the kernel DMA; DBlock always
            # uses stride=1 here, so this path is cold.
            x = x[:, :, ::self.stride, ::self.stride]
        return pointwise_conv_bn_act(x, self.w_f, self.off, relu=False)


class DBlock:
    """JAX/Pallas port of d_block.py::DBlock (eval-mode BN)."""

    def __init__(self, in_channels, out_channels, dilations, group_width, stride,
                 attention='se', key=None):
        if key is None:
            key = jax.random.PRNGKey(0)
        ks = list(jax.random.split(key, 12))
        self.stride = stride
        self.dilations = list(dilations)

        # conv1 (1x1) + bn1
        w1 = 0.1 * jax.random.normal(ks[0], (out_channels, in_channels), jnp.float32)
        bn1 = _init_bn(ks[1], out_channels)
        # conv2 (3x3 grouped / dilated / strided) + bn2
        if len(dilations) == 1:
            groups = out_channels // group_width
            w2 = [0.1 * jax.random.normal(
                ks[2], (out_channels, out_channels // groups, 3, 3), jnp.float32)]
            self._conv2_groups = [groups]
            self._conv2_channels = [out_channels]
        else:
            num_splits = len(dilations)
            assert out_channels % num_splits == 0
            cc = out_channels // num_splits
            assert cc % group_width == 0
            g = cc // group_width
            w2 = [0.1 * jax.random.normal(k, (cc, cc // g, 3, 3), jnp.float32)
                  for k in jax.random.split(ks[2], num_splits)]
            self._conv2_groups = [g] * num_splits
            self._conv2_channels = [cc] * num_splits
        bn2 = _init_bn(ks[3], out_channels)
        # conv3 (1x1) + bn3
        w3 = 0.1 * jax.random.normal(ks[4], (out_channels, out_channels), jnp.float32)
        bn3 = _init_bn(ks[5], out_channels)
        # SE attention
        if attention == 'se':
            cse = in_channels // 4
        elif attention == 'se2':
            cse = out_channels // 4
        else:
            cse = 0
        if cse > 0:
            self.se = (0.1 * jax.random.normal(ks[6], (cse, out_channels), jnp.float32),
                       0.1 * jax.random.normal(ks[7], (cse,), jnp.float32),
                       0.1 * jax.random.normal(ks[8], (out_channels, cse), jnp.float32),
                       0.1 * jax.random.normal(ks[9], (out_channels,), jnp.float32))
        else:
            self.se = None
        # shortcut branch
        self.has_shortcut = (stride != 1 or in_channels != out_channels)
        if self.has_shortcut:
            sc_w = 0.1 * jax.random.normal(ks[10], (out_channels, in_channels), jnp.float32)
            sc_bn = _init_bn(ks[11], out_channels)
        else:
            sc_w, sc_bn = None, None

        self.raw = dict(w1=w1, bn1=bn1, w2=w2, bn2=bn2, w3=w3, bn3=bn3,
                        sc_w=sc_w, sc_bn=sc_bn)

        # eval-mode BN folding (one-time, wrapper-side).
        # TODO(synk): training-mode BatchNorm (batch statistics) not supported.
        self.w1_f, self.off1 = _fold_bn(w1, bn1)
        scale2 = bn2[0] / jnp.sqrt(bn2[3] + _EPS)
        self.off2 = bn2[1] - bn2[2] * scale2
        self.w2_hwio, c0 = [], 0
        for wi, cc in zip(w2, self._conv2_channels):
            w_sc = wi * scale2[c0:c0 + cc][:, None, None, None]     # OIHW, folded
            self.w2_hwio.append(jnp.transpose(w_sc, (2, 3, 1, 0)))  # -> HWIO
            c0 += cc
        self.w3_f, self.off3 = _fold_bn(w3, bn3)
        if self.has_shortcut:
            self.sc_w_f, self.sc_off = _fold_bn(sc_w, sc_bn)

    def __call__(self, x):
        # shortcut branch
        if self.has_shortcut:
            s = avg_pool_2x2_ceil(x) if self.stride != 1 else x
            s = pointwise_conv_bn_act(s, self.sc_w_f, self.sc_off, relu=False)
        else:
            s = x
        # conv1 + bn1 + relu            (Pallas)
        h = pointwise_conv_bn_act(x, self.w1_f, self.off1, relu=True)
        # conv2 (channels-last, bn2 scale folded) + offset + relu  (XLA conv glue)
        h = grouped_dilated_conv_bn_relu(
            h, tuple(self.w2_hwio), self.off2,
            dilations=tuple(self.dilations), stride=self.stride,
            groups=self._conv2_groups[0])
        # SE gate (tiny MLP, plain JAX); the multiply is fused into conv3 below
        gate = se_gate(h, *self.se) if self.se is not None else None
        # conv3 + bn3 + SE gate + residual + relu   (Pallas, fused epilogue)
        return pointwise_conv_bn_act(h, self.w3_f, self.off3,
                                     residual=s, gate=gate, relu=True)

    # pure-JAX reference of the same math (raw, unfolded parameters, NCHW convs)
    def _conv2_ref(self, x, weights):
        parts = jnp.split(x, len(weights), axis=1) if len(weights) > 1 else [x]
        outs = []
        for xi, wi, d, g in zip(parts, weights, self.dilations, self._conv2_groups):
            outs.append(jax.lax.conv_general_dilated(
                xi, wi, window_strides=(self.stride, self.stride),
                padding=[(d, d), (d, d)], rhs_dilation=(d, d),
                dimension_numbers=('NCHW', 'OIHW', 'NCHW'),
                feature_group_count=g))
        return outs[0] if len(outs) == 1 else jnp.concatenate(outs, axis=1)

    def reference(self, x):
        r = self.raw
        if self.has_shortcut:
            s = avg_pool_2x2_ceil(x) if self.stride != 1 else x
            s = _bn_eval(_conv1x1(s, r['sc_w']), *r['sc_bn'])
        else:
            s = x
        h = jax.nn.relu(_bn_eval(_conv1x1(x, r['w1']), *r['bn1']))
        h = self._conv2_ref(h, r['w2'])
        h = jax.nn.relu(_bn_eval(h, *r['bn2']))
        if self.se is not None:
            h = _se_apply(h, *self.se)
        return jax.nn.relu(_bn_eval(_conv1x1(h, r['w3']), *r['bn3']) + s)


# ----------------------------------------------------------------------------
if __name__ == "__main__":
    key = jax.random.PRNGKey(0)
    kx, kp1, kp2, kx2 = jax.random.split(key, 4)

    # --- standalone Shortcut: 4 -> 8 channels, stride 2, NCHW ---
    x = jax.random.normal(kx, (2, 4, 16, 16), jnp.float32)
    sc = Shortcut(4, 8, stride=2, key=kp1)
    y = jax.block_until_ready(sc(x))
    assert y.shape == (2, 8, 8, 8), y.shape
    w, (g, b, m, v) = sc.params
    ref = _bn_eval(_conv1x1(x[:, :, ::2, ::2], w), g, b, m, v)
    err = float(jnp.max(jnp.abs(y - ref)))
    assert jnp.allclose(y, ref, atol=1e-4, rtol=1e-4), err

    # identity branch
    sc_id = Shortcut(4, 4, stride=1)
    assert jnp.array_equal(jax.block_until_ready(sc_id(x)), x)

    # --- full DBlock: 8 -> 16 channels, dilations [1, 2], stride 2, SE ---
    x2 = jax.random.normal(kx2, (2, 8, 16, 16), jnp.float32)
    blk = DBlock(8, 16, dilations=[1, 2], group_width=4, stride=2,
                 attention='se', key=kp2)
    y2 = jax.block_until_ready(blk(x2))
    assert y2.shape == (2, 16, 8, 8), y2.shape
    ref2 = blk.reference(x2)
    err2 = float(jnp.max(jnp.abs(y2 - ref2)))
    assert jnp.allclose(y2, ref2, atol=2e-3, rtol=2e-3), err2

    print("KERNEL_OK")
</pallas_src>

<mosaic_0001>
module attributes {stable_mosaic.version = 11 : i64} {
  func.func @_pw_conv_bn_kernel(%arg0: i32, %arg1: i32, %arg2: memref<2x4x64xf32, #tpu.memory_space<vmem>>, %arg3: memref<8x4xf32, #tpu.memory_space<vmem>>, %arg4: memref<8x1xf32, #tpu.memory_space<vmem>>, %arg5: memref<2x8x64xf32, #tpu.memory_space<vmem>>) attributes {dimension_semantics = [#tpu.dimension_semantics<parallel>, #tpu.dimension_semantics<parallel>], iteration_bounds = array<i64: 1, 1>, scalar_prefetch = 0 : i64, scratch_operands = 0 : i64, tpu.core_type = #tpu.core_type<tc>, window_params = [{transform_indices = @transform_0, window_bounds = array<i64: 2, 4, 64>}, {pipeline_mode = #tpu.pipeline_mode<synchronous>, transform_indices = @transform_1, window_bounds = array<i64: 8, 4>}, {pipeline_mode = #tpu.pipeline_mode<synchronous>, transform_indices = @transform_2, window_bounds = array<i64: 8, 1>}, {transform_indices = @transform_3, window_bounds = array<i64: 2, 8, 64>}]} {
    %c0 = arith.constant 0 : index
    %c0_0 = arith.constant 0 : index
    %0 = vector.load %arg3[%c0, %c0_0] : memref<8x4xf32, #tpu.memory_space<vmem>>, vector<8x4xf32>
    %c0_1 = arith.constant 0 : index
    %c0_2 = arith.constant 0 : index
    %1 = vector.load %arg4[%c0_1, %c0_2] : memref<8x1xf32, #tpu.memory_space<vmem>>, vector<8x1xf32>
    %c0_3 = arith.constant 0 : index
    %c0_4 = arith.constant 0 : index
    %c0_5 = arith.constant 0 : index
    %2 = vector.load %arg2[%c0_3, %c0_4, %c0_5] : memref<2x4x64xf32, #tpu.memory_space<vmem>>, vector<1x4x64xf32>
    %3 = vector.shape_cast %2 : vector<1x4x64xf32> to vector<4x64xf32>
    %4 = vector.extract_strided_slice %0 {offsets = [0, 0], sizes = [8, 1], strides = [1, 1]} : vector<8x4xf32> to vector<8x1xf32>
    %5 = vector.extract_strided_slice %3 {offsets = [0, 0], sizes = [1, 64], strides = [1, 1]} : vector<4x64xf32> to vector<1x64xf32>
    %6 = vector.broadcast %4 : vector<8x1xf32> to vector<8x64xf32>
    %7 = vector.broadcast %5 : vector<1x64xf32> to vector<8x64xf32>
    %8 = arith.mulf %6, %7 : vector<8x64xf32>
    %9 = vector.extract_strided_slice %0 {offsets = [0, 1], sizes = [8, 1], strides = [1, 1]} : vector<8x4xf32> to vector<8x1xf32>
    %10 = vector.extract_strided_slice %3 {offsets = [1, 0], sizes = [1, 64], strides = [1, 1]} : vector<4x64xf32> to vector<1x64xf32>
    %11 = vector.broadcast %9 : vector<8x1xf32> to vector<8x64xf32>
    %12 = vector.broadcast %10 : vector<1x64xf32> to vector<8x64xf32>
    %13 = arith.mulf %11, %12 : vector<8x64xf32>
    %14 = arith.addf %8, %13 : vector<8x64xf32>
    %15 = vector.extract_strided_slice %0 {offsets = [0, 2], sizes = [8, 1], strides = [1, 1]} : vector<8x4xf32> to vector<8x1xf32>
    %16 = vector.extract_strided_slice %3 {offsets = [2, 0], sizes = [1, 64], strides = [1, 1]} : vector<4x64xf32> to vector<1x64xf32>
    %17 = vector.broadcast %15 : vector<8x1xf32> to vector<8x64xf32>
    %18 = vector.broadcast %16 : vector<1x64xf32> to vector<8x64xf32>
    %19 = arith.mulf %17, %18 : vector<8x64xf32>
    %20 = arith.addf %14, %19 : vector<8x64xf32>
    %21 = vector.extract_strided_slice %0 {offsets = [0, 3], sizes = [8, 1], strides = [1, 1]} : vector<8x4xf32> to vector<8x1xf32>
    %22 = vector.extract_strided_slice %3 {offsets = [3, 0], sizes = [1, 64], strides = [1, 1]} : vector<4x64xf32> to vector<1x64xf32>
    %23 = vector.broadcast %21 : vector<8x1xf32> to vector<8x64xf32>
    %24 = vector.broadcast %22 : vector<1x64xf32> to vector<8x64xf32>
    %25 = arith.mulf %23, %24 : vector<8x64xf32>
    %26 = arith.addf %20, %25 : vector<8x64xf32>
    %27 = vector.broadcast %1 : vector<8x1xf32> to vector<8x64xf32>
    %28 = arith.addf %26, %27 : vector<8x64xf32>
    %c0_6 = arith.constant 0 : index
    %c0_7 = arith.constant 0 : index
    %c0_8 = arith.constant 0 : index
    %29 = vector.load %arg5[%c0_6, %c0_7, %c0_8] : memref<2x8x64xf32, #tpu.memory_space<vmem>>, vector<1x8x64xf32>
    %30 = vector.shape_cast %29 : vector<1x8x64xf32> to vector<8x64xf32>
    %31 = vector.shape_cast %28 : vector<8x64xf32> to vector<1x8x64xf32>
    tpu.vector_store %arg5[%c0_6, %c0_7, %c0_8], %31 {strides = array<i32>} : memref<2x8x64xf32, #tpu.memory_space<vmem>>, vector<1x8x64xf32>,
    %c1 = arith.constant 1 : index
    %c0_9 = arith.constant 0 : index
    %c0_10 = arith.constant 0 : index
    %32 = vector.load %arg2[%c1, %c0_9, %c0_10] : memref<2x4x64xf32, #tpu.memory_space<vmem>>, vector<1x4x64xf32>
    %33 = vector.shape_cast %32 : vector<1x4x64xf32> to vector<4x64xf32>
    %34 = vector.extract_strided_slice %0 {offsets = [0, 0], sizes = [8, 1], strides = [1, 1]} : vector<8x4xf32> to vector<8x1xf32>
    %35 = vector.extract_strided_slice %33 {offsets = [0, 0], sizes = [1, 64], strides = [1, 1]} : vector<4x64xf32> to vector<1x64xf32>
    %36 = vector.broadcast %34 : vector<8x1xf32> to vector<8x64xf32>
    %37 = vector.broadcast %35 : vector<1x64xf32> to vector<8x64xf32>
    %38 = arith.mulf %36, %37 : vector<8x64xf32>
    %39 = vector.extract_strided_slice %0 {offsets = [0, 1], sizes = [8, 1], strides = [1, 1]} : vector<8x4xf32> to vector<8x1xf32>
    %40 = vector.extract_strided_slice %33 {offsets = [1, 0], sizes = [1, 64], strides = [1, 1]} : vector<4x64xf32> to vector<1x64xf32>
    %41 = vector.broadcast %39 : vector<8x1xf32> to vector<8x64xf32>
    %42 = vector.broadcast %40 : vector<1x64xf32> to vector<8x64xf32>
    %43 = arith.mulf %41, %42 : vector<8x64xf32>
    %44 = arith.addf %38, %43 : vector<8x64xf32>
    %45 = vector.extract_strided_slice %0 {offsets = [0, 2], sizes = [8, 1], strides = [1, 1]} : vector<8x4xf32> to vector<8x1xf32>
    %46 = vector.extract_strided_slice %33 {offsets = [2, 0], sizes = [1, 64], strides = [1, 1]} : vector<4x64xf32> to vector<1x64xf32>
    %47 = vector.broadcast %45 : vector<8x1xf32> to vector<8x64xf32>
    %48 = vector.broadcast %46 : vector<1x64xf32> to vector<8x64xf32>
    %49 = arith.mulf %47, %48 : vector<8x64xf32>
    %50 = arith.addf %44, %49 : vector<8x64xf32>
    %51 = vector.extract_strided_slice %0 {offsets = [0, 3], sizes = [8, 1], strides = [1, 1]} : vector<8x4xf32> to vector<8x1xf32>
    %52 = vector.extract_strided_slice %33 {offsets = [3, 0], sizes = [1, 64], strides = [1, 1]} : vector<4x64xf32> to vector<1x64xf32>
    %53 = vector.broadcast %51 : vector<8x1xf32> to vector<8x64xf32>
    %54 = vector.broadcast %52 : vector<1x64xf32> to vector<8x64xf32>
    %55 = arith.mulf %53, %54 : vector<8x64xf32>
    %56 = arith.addf %50, %55 : vector<8x64xf32>
    %57 = vector.broadcast %1 : vector<8x1xf32> to vector<8x64xf32>
    %58 = arith.addf %56, %57 : vector<8x64xf32>
    %c1_11 = arith.constant 1 : index
    %c0_12 = arith.constant 0 : index
    %c0_13 = arith.constant 0 : index
    %59 = vector.load %arg5[%c1_11, %c0_12, %c0_13] : memref<2x8x64xf32, #tpu.memory_space<vmem>>, vector<1x8x64xf32>
    %60 = vector.shape_cast %59 : vector<1x8x64xf32> to vector<8x64xf32>
    %61 = vector.shape_cast %58 : vector<8x64xf32> to vector<1x8x64xf32>
    tpu.vector_store %arg5[%c1_11, %c0_12, %c0_13], %61 {strides = array<i32>} : memref<2x8x64xf32, #tpu.memory_space<vmem>>, vector<1x8x64xf32>,
    return
  }
  func.func @transform_0(%arg0: i32, %arg1: i32) -> (i32, i32, i32) {
    %c0_i32 = arith.constant 0 : i32
    %c0_i32_0 = arith.constant 0 : i32
    return %arg0, %c0_i32, %arg1 : i32, i32, i32
  }
  func.func @transform_1(%arg0: i32, %arg1: i32) -> (i32, i32) {
    %c0_i32 = arith.constant 0 : i32
    %c0_i32_0 = arith.constant 0 : i32
    %c0_i32_1 = arith.constant 0 : i32
    return %c0_i32, %c0_i32_0 : i32, i32
  }
  func.func @transform_2(%arg0: i32, %arg1: i32) -> (i32, i32) {
    %c0_i32 = arith.constant 0 : i32
    %c0_i32_0 = arith.constant 0 : i32
    %c0_i32_1 = arith.constant 0 : i32
    return %c0_i32, %c0_i32_0 : i32, i32
  }
  func.func @transform_3(%arg0: i32, %arg1: i32) -> (i32, i32, i32) {
    %c0_i32 = arith.constant 0 : i32
    %c0_i32_0 = arith.constant 0 : i32
    return %arg0, %c0_i32, %arg1 : i32, i32, i32
  }
}

</mosaic_0001>

<llo_original>
// kernel: pointwise_conv_bn_act.1
$region0: #{pointwise_conv_bn_act.1}
  #allocation0 [shape = 'u32[]', space=smem, size = 0x4, offset = 0x4, fixed_abs, tag = 'smem constant byte address 0x4 - core index']
  #allocation1 [shape = 'u32[144,128]{1,0:T(1,128)}', space=vmem, size = 0x12000, scoped, tag = 'internal scratch']
  %s0 = inlined_call_operand.vmem [shape: f32[2,4,64], index: 0, kind: input, shape index: {}]
  %s1 = inlined_call_operand.vmem [shape: f32[8,4], index: 1, kind: input, shape index: {}]
  %s2 = inlined_call_operand.vmem [shape: f32[8,1], index: 2, kind: input, shape index: {}]
  %s3 = inlined_call_operand.vmem [shape: f32[2,8,64], index: 3, kind: output, shape index: {}]
  %s4 = sld [smem:[#allocation0]]
  $region22: #{pointwise_conv_bn_act.1} parent=0
    _
  %s6 = ssub.s32 1, %s4
  %s7 = scalar_select 0, %s6, %s4
  // Predicated region
  $region2: #{pointwise_conv_bn_act.1} parent=0 // pred_check
    _
  $region3: #{pointwise_conv_bn_act.1} parent=0 // pred_check_branch
    %9 = sbr.rel (0) target = $region5
  $region4: #{pointwise_conv_bn_act.1} parent=0 // pred_region
    _
  $region5: #{pointwise_conv_bn_act.1} parent=0 // pred_fallthru
    _
  // Predicated region
  $region6: #{pointwise_conv_bn_act.1} parent=0 // pred_check
    _
  $region7: #{pointwise_conv_bn_act.1} parent=0 // pred_check_branch
    %11 = sbr.rel (0) target = $region9
  $region8: #{pointwise_conv_bn_act.1} parent=0 // pred_region
    _
  $region9: #{pointwise_conv_bn_act.1} parent=0 // pred_fallthru
    _
  // Predicated region
  $region10: #{pointwise_conv_bn_act.1} parent=0 // pred_check
    _
  $region11: #{pointwise_conv_bn_act.1} parent=0 // pred_check_branch
    %13 = sbr.rel (0) target = $region13
  $region12: #{pointwise_conv_bn_act.1} parent=0 // pred_region
    _
  $region13: #{pointwise_conv_bn_act.1} parent=0 // pred_fallthru
    _
  %v14 = vld [vmem:[%s1] sm:$0xff]
  %v15 = vld [vmem:[%s2] sm:$0xff]
  %v16 = vld [vmem:[%s0] sm:$0xf]
  %18 = vset.pattern.permute.xlu0 0
  %19 = vperm.xlu0 %18, %v14
  %v20 = vpop.permute.xlu0 %19
  %v22 = vlaneseq
  %v23 = vshrl.u32 %v22, 7
  %v24 = vsub.s32 0, %v23
  %v25 = vrot.slane %v16, %v24
  %v26 = vmul.f32 %v20, %v25
  %27 = vset.pattern.permute.xlu0 1
  %28 = vperm.xlu0 %27, %v14
  %v29 = vpop.permute.xlu0 %28
  %v31 = vlaneseq
  %v32 = vshrl.u32 %v31, 7
  %v33 = vsub.s32 1, %v32
  %v34 = vrot.slane %v16, %v33
  %v35 = vmul.f32 %v29, %v34
  %v36 = vadd.f32 %v26, %v35
  %37 = vset.pattern.permute.xlu0 2
  %38 = vperm.xlu0 %37, %v14
  %v39 = vpop.permute.xlu0 %38
  %v41 = vlaneseq
  %v42 = vshrl.u32 %v41, 7
  %v43 = vsub.s32 2, %v42
  %v44 = vrot.slane %v16, %v43
  %v45 = vmul.f32 %v39, %v44
  %v46 = vadd.f32 %v36, %v45
  %47 = vset.pattern.permute.xlu0 3
  %48 = vperm.xlu0 %47, %v14
  %v49 = vpop.permute.xlu0 %48
  %v51 = vlaneseq
  %v52 = vshrl.u32 %v51, 7
  %v53 = vsub.s32 3, %v52
  %v54 = vrot.slane %v16, %v53
  %v55 = vmul.f32 %v49, %v54
  %v56 = vadd.f32 %v46, %v55
  %58 = vset.pattern.permute.xlu0 0
  %59 = vperm.xlu0 %58, %v15
  %v60 = vpop.permute.xlu0 %59
  %v62 = vadd.f32 %v56, %v60
  %vm63 = vcmask 523264
  %64 = vst.msk [vmem:[%s3] sm:$0xff] %vm63, %v62
  %s65 = scalar_lea.vmem %s0, 4
  %v66 = vld [vmem:[%s65] sm:$0xf]
  %v67 = vlaneseq
  %v68 = vshrl.u32 %v67, 7
  %v69 = vsub.s32 0, %v68
  %v70 = vrot.slane %v66, %v69
  %v71 = vmul.f32 %v20, %v70
  %v72 = vlaneseq
  %v73 = vshrl.u32 %v72, 7
  %v74 = vsub.s32 1, %v73
  %v75 = vrot.slane %v66, %v74
  %v76 = vmul.f32 %v29, %v75
  %v77 = vadd.f32 %v71, %v76
  %v78 = vlaneseq
  %v79 = vshrl.u32 %v78, 7
  %v80 = vsub.s32 2, %v79
  %v81 = vrot.slane %v66, %v80
  %v82 = vmul.f32 %v39, %v81
  %v83 = vadd.f32 %v77, %v82
  %v84 = vlaneseq
  %v85 = vshrl.u32 %v84, 7
  %v86 = vsub.s32 3, %v85
  %v87 = vrot.slane %v66, %v86
  %v88 = vmul.f32 %v49, %v87
  %v89 = vadd.f32 %v83, %v88
  %v90 = vadd.f32 %v89, %v60
  %s91 = scalar_lea.vmem %s3, 8
  %92 = vst.msk [vmem:[%s91] sm:$0xff] %vm63, %v90
  // Predicated region
  $region14: #{pointwise_conv_bn_act.1} parent=0 // pred_check
    _
  $region15: #{pointwise_conv_bn_act.1} parent=0 // pred_check_branch
    %94 = sbr.rel (0) target = $region17
  $region16: #{pointwise_conv_bn_act.1} parent=0 // pred_region
    _
  $region17: #{pointwise_conv_bn_act.1} parent=0 // pred_fallthru
    _
  // Predicated region
  $region18: #{pointwise_conv_bn_act.1} parent=0 // pred_check
    _
  $region19: #{pointwise_conv_bn_act.1} parent=0 // pred_check_branch
    %96 = sbr.rel (0) target = $region21
  $region20: #{pointwise_conv_bn_act.1} parent=0 // pred_region
    _
  $region21: #{pointwise_conv_bn_act.1} parent=0 // pred_fallthru
    _

</llo_original>
